<compile_context>
chip_gen: v7x
topology: tpu7x:2x2x1
jax: 0.10.0
libtpu: 0.0.40
codegen_flags: <defaults>
</compile_context>

<pallas_src>
import jax
import jax.numpy as jnp
from jax.experimental import pallas as pl
from jax.experimental.pallas import tpu as pltpu

INPUT_SIZE = 140
HIDDEN = 128
CODE_SIZE = 32


def _round_up(n, m):
    return ((n + m - 1) // m) * m


def _ae_kernel(x_ref,
               w1_ref, b1_ref,
               w23_ref, b23_ref,
               w4_ref, b4_ref,
               o_ref):
    # x_ref: (tile, 140) f32 — cast to bf16 in-register for the MXU.
    x = x_ref[...].astype(jnp.bfloat16)

    # Encoder first layer: (tile,140) @ (140,128) -> (tile,128), f32 accumulate.
    h1 = jnp.dot(x, w1_ref[...], preferred_element_type=jnp.float32) + b1_ref[...]
    h1 = jnp.maximum(h1, 0.0).astype(jnp.bfloat16)

    # Fused enc_w2 @ dec_w1 (no nonlinearity between them in the original net):
    # (tile,128) @ (128,128) -> (tile,128).
    h2 = jnp.dot(h1, w23_ref[...], preferred_element_type=jnp.float32) + b23_ref[...]
    h2 = jnp.maximum(h2, 0.0).astype(jnp.bfloat16)

    # Decoder last layer: (tile,128) @ (128,140) -> (tile,140), then sigmoid.
    logits = jnp.dot(h2, w4_ref[...], preferred_element_type=jnp.float32) + b4_ref[...]
    # sigmoid(z) = 1 / (1 + exp(-z)); exp and the approx reciprocal both run on
    # the EUP slot, keeping the VALU free.
    o_ref[...] = pl.reciprocal(1.0 + jnp.exp(-logits), approx=True).astype(o_ref.dtype)


def linear_ae_forward(x, params, *, batch_tile=1024, compute_dtype=jnp.bfloat16):
    """x: (B, INPUT_SIZE) float32. params: dict of torch-layout (out, in) weights + biases."""
    B, F = x.shape
    assert F == INPUT_SIZE

    # ---- Weight prep (wrapper-side, traced once under jit) ----------------
    w1 = params["enc_w1"].T                      # (140, 128)
    b1 = params["enc_b1"].reshape(1, -1)         # (1, 128)
    w2 = params["enc_w2"].T                      # (128, 32)
    b2 = params["enc_b2"].reshape(1, -1)         # (1, 32)
    w3 = params["dec_w1"].T                      # (32, 128)
    b3 = params["dec_b1"].reshape(1, -1)         # (1, 128)
    w4 = params["dec_w2"].T                      # (128, 140)
    b4 = params["dec_b2"].reshape(1, -1)         # (1, 140)

    # Fuse the two narrow matmuls (no nonlinearity between them), in f32.
    w23 = w2 @ w3                                # (128, 128)
    b23 = b2 @ w3 + b3                           # (1, 128)

    # bf16 operands for the MXU; biases stay f32 (added to the f32 accumulator).
    w1c = w1.astype(compute_dtype)               # (140, 128)
    w23c = w23.astype(compute_dtype)             # (128, 128)
    w4c = w4.astype(compute_dtype)               # (128, 140)

    # ---- Batch tiling ------------------------------------------------------
    # Tiles are multiples of 16 rows (native bf16 sublane tile).  No ">=2 step"
    # cap (single-TC v5e/v6e gain nothing from it); only split for the 2-TC
    # "parallel" axis when each core would get a decent chunk (>= 256 rows).
    tile = min(batch_tile, _round_up(B, 16))
    if B >= 512:
        tile = min(tile, _round_up(pl.cdiv(B, 2), 16))
    grid = (pl.cdiv(B, tile),)   # partial last block is masked on store by Pallas

    full = lambda shape: pl.BlockSpec(shape, lambda i: (0, 0))

    out = pl.pallas_call(
        _ae_kernel,
        out_shape=jax.ShapeDtypeStruct((B, INPUT_SIZE), x.dtype),
        grid_spec=pltpu.PrefetchScalarGridSpec(
            num_scalar_prefetch=0,
            grid=grid,
            in_specs=[
                pl.BlockSpec((tile, INPUT_SIZE), lambda i: (i, 0)),  # x tile (f32, 140 wide)
                full(w1c.shape), full(b1.shape),
                full(w23c.shape), full(b23.shape),
                full(w4c.shape), full(b4.shape),
            ],
            out_specs=pl.BlockSpec((tile, INPUT_SIZE), lambda i: (i, 0)),
        ),
        compiler_params=pltpu.CompilerParams(
            dimension_semantics=("parallel",)),
    )(x, w1c, b1, w23c, b23, w4c, b4)

    return out


def init_params(key, input_size=INPUT_SIZE, code_size=CODE_SIZE, hidden=HIDDEN):
    """Deterministic init mimicking torch.nn.Linear default (U[-1/sqrt(fan_in), 1/sqrt(fan_in)]).
    Weights kept in torch layout (out_features, in_features)."""
    def linear(k, fan_in, fan_out):
        kw, kb = jax.random.split(k)
        bound = 1.0 / jnp.sqrt(jnp.float32(fan_in))
        w = jax.random.uniform(kw, (fan_out, fan_in), jnp.float32, -bound, bound)
        b = jax.random.uniform(kb, (fan_out,), jnp.float32, -bound, bound)
        return w, b

    k1, k2, k3, k4 = jax.random.split(key, 4)
    enc_w1, enc_b1 = linear(k1, input_size, hidden)
    enc_w2, enc_b2 = linear(k2, hidden, code_size)
    dec_w1, dec_b1 = linear(k3, code_size, hidden)
    dec_w2, dec_b2 = linear(k4, hidden, input_size)
    return dict(enc_w1=enc_w1, enc_b1=enc_b1,
                enc_w2=enc_w2, enc_b2=enc_b2,
                dec_w1=dec_w1, dec_b1=dec_b1,
                dec_w2=dec_w2, dec_b2=dec_b2)


def _reference(x, p):
    h1 = jnp.maximum(x @ p["enc_w1"].T + p["enc_b1"], 0.0)
    code = h1 @ p["enc_w2"].T + p["enc_b2"]
    h2 = jnp.maximum(code @ p["dec_w1"].T + p["dec_b1"], 0.0)
    return jax.nn.sigmoid(h2 @ p["dec_w2"].T + p["dec_b2"])


if __name__ == "__main__":
    key = jax.random.PRNGKey(0)
    kx, kp = jax.random.split(key)

    B = 16
    x = jax.random.normal(kx, (B, INPUT_SIZE), jnp.float32)
    params = init_params(kp)

    out = linear_ae_forward(x, params)            # bf16 MXU path, f32 accum
    out = jax.block_until_ready(out)

    ref = _reference(x, params)
    assert out.shape == (B, INPUT_SIZE)
    # bf16 operands + w2@w3 re-association + approx reciprocal -> loosen
    # tolerance vs the f32 reference.
    assert jnp.allclose(out, ref, atol=2e-2, rtol=2e-2), \
        f"max abs err = {jnp.max(jnp.abs(out - ref))}"

    print("KERNEL_OK")
</pallas_src>

<mosaic_0001>
module attributes {stable_mosaic.version = 11 : i64} {
  func.func @_ae_kernel(%arg0: i32, %arg1: memref<16x140xf32, #tpu.memory_space<vmem>>, %arg2: memref<140x128xbf16, #tpu.memory_space<vmem>>, %arg3: memref<1x128xf32, #tpu.memory_space<vmem>>, %arg4: memref<128x128xbf16, #tpu.memory_space<vmem>>, %arg5: memref<1x128xf32, #tpu.memory_space<vmem>>, %arg6: memref<128x140xbf16, #tpu.memory_space<vmem>>, %arg7: memref<1x140xf32, #tpu.memory_space<vmem>>, %arg8: memref<16x140xf32, #tpu.memory_space<vmem>>) attributes {dimension_semantics = [#tpu.dimension_semantics<parallel>], iteration_bounds = array<i64: 1>, scalar_prefetch = 0 : i64, scratch_operands = 0 : i64, tpu.core_type = #tpu.core_type<tc>, window_params = [{transform_indices = @transform_0, window_bounds = array<i64: 16, 140>}, {pipeline_mode = #tpu.pipeline_mode<synchronous>, transform_indices = @transform_1, window_bounds = array<i64: 140, 128>}, {pipeline_mode = #tpu.pipeline_mode<synchronous>, transform_indices = @transform_2, window_bounds = array<i64: 1, 128>}, {pipeline_mode = #tpu.pipeline_mode<synchronous>, transform_indices = @transform_3, window_bounds = array<i64: 128, 128>}, {pipeline_mode = #tpu.pipeline_mode<synchronous>, transform_indices = @transform_4, window_bounds = array<i64: 1, 128>}, {pipeline_mode = #tpu.pipeline_mode<synchronous>, transform_indices = @transform_5, window_bounds = array<i64: 128, 140>}, {pipeline_mode = #tpu.pipeline_mode<synchronous>, transform_indices = @transform_6, window_bounds = array<i64: 1, 140>}, {transform_indices = @transform_7, window_bounds = array<i64: 16, 140>}]} {
    %c0 = arith.constant 0 : index
    %c0_0 = arith.constant 0 : index
    %0 = vector.load %arg1[%c0, %c0_0] : memref<16x140xf32, #tpu.memory_space<vmem>>, vector<16x140xf32>
    %1 = arith.truncf %0 : vector<16x140xf32> to vector<16x140xbf16>
    %c0_1 = arith.constant 0 : index
    %c0_2 = arith.constant 0 : index
    %2 = vector.load %arg2[%c0_1, %c0_2] : memref<140x128xbf16, #tpu.memory_space<vmem>>, vector<140x128xbf16>
    %cst = arith.constant dense<0.000000e+00> : vector<16x128xf32>
    %3 = tpu.matmul %1, %2, %cst {dimension_numbers = #tpu.dot_dimension_numbers<[1], [0], [0], [1], [0, 0, 1, 1], [], []>} : vector<16x140xbf16>, vector<140x128xbf16>, vector<16x128xf32> -> vector<16x128xf32>
    %c0_3 = arith.constant 0 : index
    %c0_4 = arith.constant 0 : index
    %4 = vector.load %arg3[%c0_3, %c0_4] : memref<1x128xf32, #tpu.memory_space<vmem>>, vector<1x128xf32>
    %5 = vector.broadcast %4 : vector<1x128xf32> to vector<16x128xf32>
    %6 = arith.addf %3, %5 : vector<16x128xf32>
    %cst_5 = arith.constant 0.000000e+00 : f32
    %7 = vector.broadcast %cst_5 : f32 to vector<16x128xf32>
    %8 = arith.maximumf %6, %7 : vector<16x128xf32>
    %9 = arith.truncf %8 : vector<16x128xf32> to vector<16x128xbf16>
    %c0_6 = arith.constant 0 : index
    %c0_7 = arith.constant 0 : index
    %10 = vector.load %arg4[%c0_6, %c0_7] : memref<128x128xbf16, #tpu.memory_space<vmem>>, vector<128x128xbf16>
    %cst_8 = arith.constant dense<0.000000e+00> : vector<16x128xf32>
    %11 = tpu.matmul %9, %10, %cst_8 {dimension_numbers = #tpu.dot_dimension_numbers<[1], [0], [0], [1], [0, 0, 1, 1], [], []>} : vector<16x128xbf16>, vector<128x128xbf16>, vector<16x128xf32> -> vector<16x128xf32>
    %c0_9 = arith.constant 0 : index
    %c0_10 = arith.constant 0 : index
    %12 = vector.load %arg5[%c0_9, %c0_10] : memref<1x128xf32, #tpu.memory_space<vmem>>, vector<1x128xf32>
    %13 = vector.broadcast %12 : vector<1x128xf32> to vector<16x128xf32>
    %14 = arith.addf %11, %13 : vector<16x128xf32>
    %cst_11 = arith.constant 0.000000e+00 : f32
    %15 = vector.broadcast %cst_11 : f32 to vector<16x128xf32>
    %16 = arith.maximumf %14, %15 : vector<16x128xf32>
    %17 = arith.truncf %16 : vector<16x128xf32> to vector<16x128xbf16>
    %c0_12 = arith.constant 0 : index
    %c0_13 = arith.constant 0 : index
    %18 = vector.load %arg6[%c0_12, %c0_13] : memref<128x140xbf16, #tpu.memory_space<vmem>>, vector<128x140xbf16>
    %cst_14 = arith.constant dense<0.000000e+00> : vector<16x140xf32>
    %19 = tpu.matmul %17, %18, %cst_14 {dimension_numbers = #tpu.dot_dimension_numbers<[1], [0], [0], [1], [0, 0, 1, 1], [], []>} : vector<16x128xbf16>, vector<128x140xbf16>, vector<16x140xf32> -> vector<16x140xf32>
    %c0_15 = arith.constant 0 : index
    %c0_16 = arith.constant 0 : index
    %20 = vector.load %arg7[%c0_15, %c0_16] : memref<1x140xf32, #tpu.memory_space<vmem>>, vector<1x140xf32>
    %21 = vector.broadcast %20 : vector<1x140xf32> to vector<16x140xf32>
    %22 = arith.addf %19, %21 : vector<16x140xf32>
    %cst_17 = arith.constant 0.000000e+00 : f32
    %23 = vector.broadcast %cst_17 : f32 to vector<16x140xf32>
    %24 = arith.subf %23, %22 : vector<16x140xf32>
    %25 = math.exp %24 : vector<16x140xf32>
    %cst_18 = arith.constant 1.000000e+00 : f32
    %26 = vector.broadcast %cst_18 : f32 to vector<16x140xf32>
    %27 = arith.addf %26, %25 : vector<16x140xf32>
    %28 = tpu.reciprocal %27 {approx = true} : vector<16x140xf32> -> vector<16x140xf32>
    %c0_19 = arith.constant 0 : index
    %c0_20 = arith.constant 0 : index
    %29 = vector.load %arg8[%c0_19, %c0_20] : memref<16x140xf32, #tpu.memory_space<vmem>>, vector<16x140xf32>
    tpu.vector_store %arg8[%c0_19, %c0_20], %28 {strides = array<i32>} : memref<16x140xf32, #tpu.memory_space<vmem>>, vector<16x140xf32>,
    return
  }
  func.func @transform_0(%arg0: i32) -> (i32, i32) {
    %c0_i32 = arith.constant 0 : i32
    %c0_i32_0 = arith.constant 0 : i32
    return %arg0, %c0_i32 : i32, i32
  }
  func.func @transform_1(%arg0: i32) -> (i32, i32) {
    %c0_i32 = arith.constant 0 : i32
    %c0_i32_0 = arith.constant 0 : i32
    %c0_i32_1 = arith.constant 0 : i32
    return %c0_i32, %c0_i32_0 : i32, i32
  }
  func.func @transform_2(%arg0: i32) -> (i32, i32) {
    %c0_i32 = arith.constant 0 : i32
    %c0_i32_0 = arith.constant 0 : i32
    %c0_i32_1 = arith.constant 0 : i32
    return %c0_i32, %c0_i32_0 : i32, i32
  }
  func.func @transform_3(%arg0: i32) -> (i32, i32) {
    %c0_i32 = arith.constant 0 : i32
    %c0_i32_0 = arith.constant 0 : i32
    %c0_i32_1 = arith.constant 0 : i32
    return %c0_i32, %c0_i32_0 : i32, i32
  }
  func.func @transform_4(%arg0: i32) -> (i32, i32) {
    %c0_i32 = arith.constant 0 : i32
    %c0_i32_0 = arith.constant 0 : i32
    %c0_i32_1 = arith.constant 0 : i32
    return %c0_i32, %c0_i32_0 : i32, i32
  }
  func.func @transform_5(%arg0: i32) -> (i32, i32) {
    %c0_i32 = arith.constant 0 : i32
    %c0_i32_0 = arith.constant 0 : i32
    %c0_i32_1 = arith.constant 0 : i32
    return %c0_i32, %c0_i32_0 : i32, i32
  }
  func.func @transform_6(%arg0: i32) -> (i32, i32) {
    %c0_i32 = arith.constant 0 : i32
    %c0_i32_0 = arith.constant 0 : i32
    %c0_i32_1 = arith.constant 0 : i32
    return %c0_i32, %c0_i32_0 : i32, i32
  }
  func.func @transform_7(%arg0: i32) -> (i32, i32) {
    %c0_i32 = arith.constant 0 : i32
    %c0_i32_0 = arith.constant 0 : i32
    return %arg0, %c0_i32 : i32, i32
  }
}

</mosaic_0001>

<llo_original>
// kernel: tpu_custom_call.1
$region0: #{tpu_custom_call.1}
  #allocation0 [shape = 'u32[]', space=smem, size = 0x4, offset = 0x4, fixed_abs, tag = 'smem constant byte address 0x4 - core index']
  #allocation1 [shape = 'u32[144,128]{1,0:T(1,128)}', space=vmem, size = 0x12000, scoped, tag = 'internal scratch']
  %s0 = inlined_call_operand.vmem [shape: f32[16,140], index: 0, kind: input, shape index: {}]
  %s1 = inlined_call_operand.vmem [shape: bf16[140,128], index: 1, kind: input, shape index: {}]
  %s2 = inlined_call_operand.vmem [shape: f32[1,128], index: 2, kind: input, shape index: {}]
  %s3 = inlined_call_operand.vmem [shape: bf16[128,128], index: 3, kind: input, shape index: {}]
  %s4 = inlined_call_operand.vmem [shape: f32[1,128], index: 4, kind: input, shape index: {}]
  %s5 = inlined_call_operand.vmem [shape: bf16[128,140], index: 5, kind: input, shape index: {}]
  %s6 = inlined_call_operand.vmem [shape: f32[1,140], index: 6, kind: input, shape index: {}]
  %s7 = inlined_call_operand.hbm [shape: f32[16,140], index: 7, kind: output, shape index: {}]
  %s8 = sld [smem:[#allocation0]]
  $region38: #{tpu_custom_call.1} parent=0
    _
  %s10 = ssub.s32 1, %s8
  %s11 = scalar_select 0, %s10, %s8
  $region1: #{tpu_custom_call.1} parent=0
    #allocation2 [shape = 'u8[16384]{0}', space=vmem, size = 0x4000, scoped, tag = 'output window, operand 0, single buffered']
    #allocation3 [shape = 's32[1]{0}', space=sflag, size = 0x4, scoped, tag = 'scoped memory for tpu_custom_call.1']
    %12 = vsyncpa [#allocation3], 0
    // Predicated region
    $region2: #{tpu_custom_call.1} parent=1 // pred_check
      _
    $region3: #{tpu_custom_call.1} parent=1 // pred_check_branch
      %14 = sbr.rel (0) target = $region5
    $region4: #{tpu_custom_call.1} parent=1 // pred_region
      _
    $region5: #{tpu_custom_call.1} parent=1 // pred_fallthru
      _
    // Predicated region
    $region6: #{tpu_custom_call.1} parent=1 // pred_check
      _
    $region7: #{tpu_custom_call.1} parent=1 // pred_check_branch
      %16 = sbr.rel (0) target = $region9
    $region8: #{tpu_custom_call.1} parent=1 // pred_region
      _
    $region9: #{tpu_custom_call.1} parent=1 // pred_fallthru
      _
    // Predicated region
    $region10: #{tpu_custom_call.1} parent=1 // pred_check
      _
    $region11: #{tpu_custom_call.1} parent=1 // pred_check_branch
      %18 = sbr.rel (0) target = $region13
    $region12: #{tpu_custom_call.1} parent=1 // pred_region
      _
    $region13: #{tpu_custom_call.1} parent=1 // pred_fallthru
      _
    // Predicated region
    $region14: #{tpu_custom_call.1} parent=1 // pred_check
      _
    $region15: #{tpu_custom_call.1} parent=1 // pred_check_branch
      %20 = sbr.rel (0) target = $region17
    $region16: #{tpu_custom_call.1} parent=1 // pred_region
      _
    $region17: #{tpu_custom_call.1} parent=1 // pred_fallthru
      _
    // Predicated region
    $region18: #{tpu_custom_call.1} parent=1 // pred_check
      _
    $region19: #{tpu_custom_call.1} parent=1 // pred_check_branch
      %22 = sbr.rel (0) target = $region21
    $region20: #{tpu_custom_call.1} parent=1 // pred_region
      _
    $region21: #{tpu_custom_call.1} parent=1 // pred_fallthru
      _
    // Predicated region
    $region22: #{tpu_custom_call.1} parent=1 // pred_check
      _
    $region23: #{tpu_custom_call.1} parent=1 // pred_check_branch
      %24 = sbr.rel (0) target = $region25
    $region24: #{tpu_custom_call.1} parent=1 // pred_region
      _
    $region25: #{tpu_custom_call.1} parent=1 // pred_fallthru
      _
    // Predicated region
    $region26: #{tpu_custom_call.1} parent=1 // pred_check
      _
    $region27: #{tpu_custom_call.1} parent=1 // pred_check_branch
      %26 = sbr.rel (0) target = $region29
    $region28: #{tpu_custom_call.1} parent=1 // pred_region
      _
    $region29: #{tpu_custom_call.1} parent=1 // pred_fallthru
      _
    %v28 = vld [vmem:[%s0] sm:$0xff]
    %v29 = vld [vmem:[%s0 + $0x8] sm:$0xff]
    %v30 = vld [vmem:[%s0 + $0x10] sm:$0xff]
    %v31 = vld [vmem:[%s0 + $0x18] sm:$0xff]
    %v32 = vpack.c.bf16 %v30, %v28
    %v33 = vpack.c.bf16 %v31, %v29
    %v34 = vld [vmem:[%s1] sm:$0xf]
    %v35 = vld [vmem:[%s1 + $0x4] sm:$0xf]
    %v36 = vld [vmem:[%s1 + $0x8] sm:$0xf]
    %v37 = vld [vmem:[%s1 + $0xc] sm:$0xf]
    %v38 = vld [vmem:[%s1 + $0x10] sm:$0xf]
    %v39 = vld [vmem:[%s1 + $0x14] sm:$0xf]
    %v40 = vld [vmem:[%s1 + $0x18] sm:$0xf]
    %v41 = vld [vmem:[%s1 + $0x1c] sm:$0xf]
    %v42 = vld [vmem:[%s1 + $0x20] sm:$0xf]
    %v43 = vld [vmem:[%s1 + $0x24] sm:$0xf]
    %v44 = vld [vmem:[%s1 + $0x28] sm:$0xf]
    %v45 = vld [vmem:[%s1 + $0x2c] sm:$0xf]
    %v46 = vld [vmem:[%s1 + $0x30] sm:$0xf]
    %v47 = vld [vmem:[%s1 + $0x34] sm:$0xf]
    %v48 = vld [vmem:[%s1 + $0x38] sm:$0xf]
    %v49 = vld [vmem:[%s1 + $0x3c] sm:$0xf]
    %v50 = vld [vmem:[%s1 + $0x40] sm:$0xf]
    %v51 = vld [vmem:[%s1 + $0x44] sm:$0x3]
    %v52 = vld [vmem:[%s2] sm:$0x1]
    %v54 = vlaneseq
    %v55 = vshrl.u32 %v54, 7
    %v56 = vsub.s32 0, %v55
    %v57 = vrot.slane %v52, %v56
    %v77 = vunpack.c.l.b16 %v34
    %v78 = vunpack.c.l.b16 %v35
    %v79 = vunpack.c.l.b16 %v36
    %v80 = vunpack.c.l.b16 %v37
    %v81 = vunpack.c.l.b16 %v38
    %v82 = vunpack.c.l.b16 %v39
    %v83 = vunpack.c.l.b16 %v40
    %v84 = vunpack.c.l.b16 %v41
    %v85 = vunpack.c.l.b16 %v42
    %v86 = vunpack.c.l.b16 %v43
    %v87 = vunpack.c.l.b16 %v44
    %v88 = vunpack.c.l.b16 %v45
    %v89 = vunpack.c.l.b16 %v46
    %v90 = vunpack.c.l.b16 %v47
    %v91 = vunpack.c.l.b16 %v48
    %v92 = vunpack.c.l.b16 %v49
    %v93 = vunpack.c.l.b16 %v50
    %v94 = vunpack.c.l.b16 %v51
    %v95 = vpack.c.b16 %v78, %v77
    %v96 = vpack.c.b16 %v80, %v79
    %v97 = vpack.c.b16 %v82, %v81
    %v98 = vpack.c.b16 %v84, %v83
    %v99 = vpack.c.b16 %v86, %v85
    %v100 = vpack.c.b16 %v88, %v87
    %v101 = vpack.c.b16 %v90, %v89
    %v102 = vpack.c.b16 %v92, %v91
    %v103 = vpack.c.b16 %v94, %v93
    %vm112 = vcmask 97280
    %v114 = vsel %vm112, %v33, 0
    %vm116 = vcmask 1045504
    %v118 = vsel %vm116, %v103, 0
    %120 = vmatprep.subr.bf16.mxu0 0
    %121 = vmatpush1.bf16.msra.mxu0 %v95
    %122 = vmatprep.subr.bf16.mxu0 0
    %123 = vmatpush1.bf16.msra.mxu0 %v96
    %124 = vmatprep.subr.bf16.mxu0 0
    %125 = vmatpush1.bf16.msra.mxu0 %v97
    %126 = vmatprep.subr.bf16.mxu0 0
    %127 = vmatpush1.bf16.msra.mxu0 %v98
    %128 = vmatprep.subr.bf16.mxu0 0
    %129 = vmatpush1.bf16.msra.mxu0 %v99
    %130 = vmatprep.subr.bf16.mxu0 0
    %131 = vmatpush1.bf16.msra.mxu0 %v100
    %132 = vmatprep.subr.bf16.mxu0 0
    %133 = vmatpush1.bf16.msra.mxu0 %v101
    %134 = vmatprep.subr.bf16.mxu0 0
    %135 = vmatpush1.bf16.msra.mxu0 %v102
    %136 = vmatprep.subr.bf16.mxu0 0
    %137 = vmatpush1.bf16.msra.mxu0 %v118
    %138 = vmatprep.subr.bf16.mxu0 0
    %139 = vmatpush1.bf16.msra.mxu0 0
    %140 = vmatprep.subr.bf16.mxu0 0
    %141 = vmatpush1.bf16.msra.mxu0 0
    %142 = vmatprep.subr.bf16.mxu0 0
    %143 = vmatpush1.bf16.msra.mxu0 0
    %144 = vmatprep.subr.bf16.mxu0 0
    %145 = vmatpush1.bf16.msra.mxu0 0
    %146 = vmatprep.subr.bf16.mxu0 0
    %147 = vmatpush1.bf16.msra.mxu0 0
    %148 = vmatprep.subr.bf16.mxu0 0
    %149 = vmatpush1.bf16.msra.mxu0 0
    %150 = vmatprep.subr.bf16.mxu0 0
    %151 = vmatpush1.bf16.msra.mxu0 0
    %152 = vmatprep.mubr.bf16.mxu0 %v114
    %153 = vmatmul.mubr.bf16.gmra.mrb[0].mxu0 %v32
    %v154 = vpop.f32.mrb[0].mxu0
    %v155 = vadd.f32 %v57, %v154
    %v156 = vpop.f32.mrb[0].mxu0
    %v157 = vpop.f32.mrb[0].mxu0
    %v158 = vadd.f32 %v57, %v157
    %v159 = vpop.f32.mrb[0].mxu0
    %160 = vdwg.mxu0
    %v161 = vmax.f32 %v155, 0.0
    %v162 = vmax.f32 %v158, 0.0
    %v163 = vpack.c.bf16 %v162, %v161
    %v164 = vld [vmem:[%s3] sm:$0xf]
    %v165 = vld [vmem:[%s3 + $0x4] sm:$0xf]
    %v166 = vld [vmem:[%s3 + $0x8] sm:$0xf]
    %v167 = vld [vmem:[%s3 + $0xc] sm:$0xf]
    %v168 = vld [vmem:[%s3 + $0x10] sm:$0xf]
    %v169 = vld [vmem:[%s3 + $0x14] sm:$0xf]
    %v170 = vld [vmem:[%s3 + $0x18] sm:$0xf]
    %v171 = vld [vmem:[%s3 + $0x1c] sm:$0xf]
    %v172 = vld [vmem:[%s3 + $0x20] sm:$0xf]
    %v173 = vld [vmem:[%s3 + $0x24] sm:$0xf]
    %v174 = vld [vmem:[%s3 + $0x28] sm:$0xf]
    %v175 = vld [vmem:[%s3 + $0x2c] sm:$0xf]
    %v176 = vld [vmem:[%s3 + $0x30] sm:$0xf]
    %v177 = vld [vmem:[%s3 + $0x34] sm:$0xf]
    %v178 = vld [vmem:[%s3 + $0x38] sm:$0xf]
    %v179 = vld [vmem:[%s3 + $0x3c] sm:$0xf]
    %v180 = vld [vmem:[%s4] sm:$0x1]
    %v182 = vlaneseq
    %v183 = vshrl.u32 %v182, 7
    %v184 = vsub.s32 0, %v183
    %v185 = vrot.slane %v180, %v184
    %v203 = vunpack.c.l.b16 %v164
    %v204 = vunpack.c.l.b16 %v165
    %v205 = vunpack.c.l.b16 %v166
    %v206 = vunpack.c.l.b16 %v167
    %v207 = vunpack.c.l.b16 %v168
    %v208 = vunpack.c.l.b16 %v169
    %v209 = vunpack.c.l.b16 %v170
    %v210 = vunpack.c.l.b16 %v171
    %v211 = vunpack.c.l.b16 %v172
    %v212 = vunpack.c.l.b16 %v173
    %v213 = vunpack.c.l.b16 %v174
    %v214 = vunpack.c.l.b16 %v175
    %v215 = vunpack.c.l.b16 %v176
    %v216 = vunpack.c.l.b16 %v177
    %v217 = vunpack.c.l.b16 %v178
    %v218 = vunpack.c.l.b16 %v179
    %v219 = vpack.c.b16 %v204, %v203
    %v220 = vpack.c.b16 %v206, %v205
    %v221 = vpack.c.b16 %v208, %v207
    %v222 = vpack.c.b16 %v210, %v209
    %v223 = vpack.c.b16 %v212, %v211
    %v224 = vpack.c.b16 %v214, %v213
    %v225 = vpack.c.b16 %v216, %v215
    %v226 = vpack.c.b16 %v218, %v217
    %235 = vmatprep.subr.bf16.mxu0 0
    %236 = vmatpush1.bf16.msra.mxu0 %v219
    %237 = vmatprep.subr.bf16.mxu0 0
    %238 = vmatpush1.bf16.msra.mxu0 %v220
    %239 = vmatprep.subr.bf16.mxu0 0
    %240 = vmatpush1.bf16.msra.mxu0 %v221
    %241 = vmatprep.subr.bf16.mxu0 0
    %242 = vmatpush1.bf16.msra.mxu0 %v222
    %243 = vmatprep.subr.bf16.mxu0 0
    %244 = vmatpush1.bf16.msra.mxu0 %v223
    %245 = vmatprep.subr.bf16.mxu0 0
    %246 = vmatpush1.bf16.msra.mxu0 %v224
    %247 = vmatprep.subr.bf16.mxu0 0
    %248 = vmatpush1.bf16.msra.mxu0 %v225
    %249 = vmatprep.subr.bf16.mxu0 0
    %250 = vmatpush1.bf16.msra.mxu0 %v226
    %251 = vmatprep.subr.bf16.mxu0 0
    %252 = vmatpush1.bf16.msra.mxu0 0
    %253 = vmatprep.subr.bf16.mxu0 0
    %254 = vmatpush1.bf16.msra.mxu0 0
    %255 = vmatprep.subr.bf16.mxu0 0
    %256 = vmatpush1.bf16.msra.mxu0 0
    %257 = vmatprep.subr.bf16.mxu0 0
    %258 = vmatpush1.bf16.msra.mxu0 0
    %259 = vmatprep.subr.bf16.mxu0 0
    %260 = vmatpush1.bf16.msra.mxu0 0
    %261 = vmatprep.subr.bf16.mxu0 0
    %262 = vmatpush1.bf16.msra.mxu0 0
    %263 = vmatprep.subr.bf16.mxu0 0
    %264 = vmatpush1.bf16.msra.mxu0 0
    %265 = vmatprep.subr.bf16.mxu0 0
    %266 = vmatpush1.bf16.msra.mxu0 0
    %267 = vmatprep.mubr.bf16.mxu0 0
    %268 = vmatmul.mubr.bf16.gmra.mrb[0].mxu0 %v163
    %v269 = vpop.f32.mrb[0].mxu0
    %v270 = vadd.f32 %v185, %v269
    %v271 = vpop.f32.mrb[0].mxu0
    %v272 = vpop.f32.mrb[0].mxu0
    %v273 = vadd.f32 %v185, %v272
    %v274 = vpop.f32.mrb[0].mxu0
    %275 = vdwg.mxu0
    %v276 = vmax.f32 %v270, 0.0
    %v277 = vmax.f32 %v273, 0.0
    %v278 = vpack.c.bf16 %v277, %v276
    %v279 = vld [vmem:[%s5] sm:$0xff]
    %v280 = vld [vmem:[%s5 + $0x8] sm:$0xff]
    %v281 = vld [vmem:[%s5 + $0x10] sm:$0xff]
    %v282 = vld [vmem:[%s5 + $0x18] sm:$0xff]
    %v283 = vld [vmem:[%s5 + $0x20] sm:$0xff]
    %v284 = vld [vmem:[%s5 + $0x28] sm:$0xff]
    %v285 = vld [vmem:[%s5 + $0x30] sm:$0xff]
    %v286 = vld [vmem:[%s5 + $0x38] sm:$0xff]
    %v287 = vld [vmem:[%s5 + $0x40] sm:$0xff]
    %v288 = vld [vmem:[%s5 + $0x48] sm:$0xff]
    %v289 = vld [vmem:[%s5 + $0x50] sm:$0xff]
    %v290 = vld [vmem:[%s5 + $0x58] sm:$0xff]
    %v291 = vld [vmem:[%s5 + $0x60] sm:$0xff]
    %v292 = vld [vmem:[%s5 + $0x68] sm:$0xff]
    %v293 = vld [vmem:[%s5 + $0x70] sm:$0xff]
    %v294 = vld [vmem:[%s5 + $0x78] sm:$0xff]
    %v295 = vld [vmem:[%s6] sm:$0x3]
    %v297 = vlaneseq
    %v298 = vshrl.u32 %v297, 7
    %v299 = vsub.s32 0, %v298
    %v300 = vrot.slane %v295, %v299
    %v301 = vlaneseq
    %v302 = vshrl.u32 %v301, 7
    %v303 = vsub.s32 1, %v302
    %v304 = vrot.slane %v295, %v303
    %v323 = vunpack.c.l.b16 %v279
    %v324 = vunpack.c.h.b16 %v279
    %v325 = vunpack.c.l.b16 %v280
    %v326 = vunpack.c.h.b16 %v280
    %v327 = vunpack.c.l.b16 %v281
    %v328 = vunpack.c.h.b16 %v281
    %v329 = vunpack.c.l.b16 %v282
    %v330 = vunpack.c.h.b16 %v282
    %v331 = vunpack.c.l.b16 %v283
    %v332 = vunpack.c.h.b16 %v283
    %v333 = vunpack.c.l.b16 %v284
    %v334 = vunpack.c.h.b16 %v284
    %v335 = vunpack.c.l.b16 %v285
    %v336 = vunpack.c.h.b16 %v285
    %v337 = vunpack.c.l.b16 %v286
    %v338 = vunpack.c.h.b16 %v286
    %v339 = vunpack.c.l.b16 %v287
    %v340 = vunpack.c.h.b16 %v287
    %v341 = vunpack.c.l.b16 %v288
    %v342 = vunpack.c.h.b16 %v288
    %v343 = vunpack.c.l.b16 %v289
    %v344 = vunpack.c.h.b16 %v289
    %v345 = vunpack.c.l.b16 %v290
    %v346 = vunpack.c.h.b16 %v290
    %v347 = vunpack.c.l.b16 %v291
    %v348 = vunpack.c.h.b16 %v291
    %v349 = vunpack.c.l.b16 %v292
    %v350 = vunpack.c.h.b16 %v292
    %v351 = vunpack.c.l.b16 %v293
    %v352 = vunpack.c.h.b16 %v293
    %v353 = vunpack.c.l.b16 %v294
    %v354 = vunpack.c.h.b16 %v294
    %v355 = vpack.c.b16 %v325, %v323
    %v356 = vpack.c.b16 %v326, %v324
    %v357 = vpack.c.b16 %v329, %v327
    %v358 = vpack.c.b16 %v330, %v328
    %v359 = vpack.c.b16 %v333, %v331
    %v360 = vpack.c.b16 %v334, %v332
    %v361 = vpack.c.b16 %v337, %v335
    %v362 = vpack.c.b16 %v338, %v336
    %v363 = vpack.c.b16 %v341, %v339
    %v364 = vpack.c.b16 %v342, %v340
    %v365 = vpack.c.b16 %v345, %v343
    %v366 = vpack.c.b16 %v346, %v344
    %v367 = vpack.c.b16 %v349, %v347
    %v368 = vpack.c.b16 %v350, %v348
    %v369 = vpack.c.b16 %v353, %v351
    %v370 = vpack.c.b16 %v354, %v352
    %387 = vmatprep.subr.bf16.mxu0 %v356
    %388 = vmatpush1.bf16.msra.mxu0 %v355
    %389 = vmatprep.subr.bf16.mxu0 %v358
    %390 = vmatpush1.bf16.msra.mxu0 %v357
    %391 = vmatprep.subr.bf16.mxu0 %v360
    %392 = vmatpush1.bf16.msra.mxu0 %v359
    %393 = vmatprep.subr.bf16.mxu0 %v362
    %394 = vmatpush1.bf16.msra.mxu0 %v361
    %395 = vmatprep.subr.bf16.mxu0 %v364
    %396 = vmatpush1.bf16.msra.mxu0 %v363
    %397 = vmatprep.subr.bf16.mxu0 %v366
    %398 = vmatpush1.bf16.msra.mxu0 %v365
    %399 = vmatprep.subr.bf16.mxu0 %v368
    %400 = vmatpush1.bf16.msra.mxu0 %v367
    %401 = vmatprep.subr.bf16.mxu0 %v370
    %402 = vmatpush1.bf16.msra.mxu0 %v369
    %403 = vmatprep.subr.bf16.mxu0 0
    %404 = vmatpush1.bf16.msra.mxu0 0
    %405 = vmatprep.subr.bf16.mxu0 0
    %406 = vmatpush1.bf16.msra.mxu0 0
    %407 = vmatprep.subr.bf16.mxu0 0
    %408 = vmatpush1.bf16.msra.mxu0 0
    %409 = vmatprep.subr.bf16.mxu0 0
    %410 = vmatpush1.bf16.msra.mxu0 0
    %411 = vmatprep.subr.bf16.mxu0 0
    %412 = vmatpush1.bf16.msra.mxu0 0
    %413 = vmatprep.subr.bf16.mxu0 0
    %414 = vmatpush1.bf16.msra.mxu0 0
    %415 = vmatprep.subr.bf16.mxu0 0
    %416 = vmatpush1.bf16.msra.mxu0 0
    %417 = vmatprep.subr.bf16.mxu0 0
    %418 = vmatpush1.bf16.msra.mxu0 0
    %419 = vmatprep.mubr.bf16.mxu0 0
    %420 = vmatmul.mubr.bf16.gmra.mrb[0].mxu0 %v278
    %v421 = vpop.f32.mrb[0].mxu0
    %v422 = vadd.f32 %v300, %v421
    %v423 = vpop.f32.mrb[0].mxu0
    %v424 = vadd.f32 %v304, %v423
    %v425 = vpop.f32.mrb[0].mxu0
    %v426 = vadd.f32 %v300, %v425
    %v427 = vpop.f32.mrb[0].mxu0
    %v428 = vadd.f32 %v304, %v427
    %429 = vdwg.mxu0
    %v430 = vsub.f32 0.0, %v422
    %v431 = vsub.f32 0.0, %v424
    %v432 = vsub.f32 0.0, %v426
    %v433 = vsub.f32 0.0, %v428
    %v434 = vmul.f32 %v430, 1.442695
    %v435 = vpow.pop %v434
    %v436 = vmul.f32 %v431, 1.442695
    %v437 = vpow.pop %v436
    %v438 = vmul.f32 %v432, 1.442695
    %v439 = vpow.pop %v438
    %v440 = vmul.f32 %v433, 1.442695
    %v441 = vpow.pop %v440
    %v442 = vadd.f32 %v435, 1.0
    %v443 = vadd.f32 %v437, 1.0
    %v444 = vadd.f32 %v439, 1.0
    %v445 = vadd.f32 %v441, 1.0
    %v446 = vrcp.pop %v442
    %v447 = vrcp.pop %v443
    %v448 = vrcp.pop %v444
    %v449 = vrcp.pop %v445
    %450 = vst [vmem:[#allocation2] sm:$0xff] %v446
    %451 = vst.msk [vmem:[#allocation2 + $0x8] sm:$0xff] %vm112, %v447
    %452 = vst [vmem:[#allocation2 + $0x10] sm:$0xff] %v448
    %453 = vst.msk [vmem:[#allocation2 + $0x18] sm:$0xff] %vm112, %v449
    // Predicated region
    $region30: #{tpu_custom_call.1} parent=1 // pred_check
      _
    $region31: #{tpu_custom_call.1} parent=1 // pred_check_branch
      %455 = sbr.rel (0) target = $region33
    $region32: #{tpu_custom_call.1} parent=1 // pred_region
      %s457 = ssub.s32 512, 512
      %458 = vsyncadd [#allocation3], %s457
      %s459 = sshll.u32 [#allocation2], 4
      %s460 = int_to_ptr.vmem [resolvable:$true] %s459
      %465 = dma.vmem_to_hbm [thread:$0]  %s460, 512, %s7, [#allocation3], 256, 256, 16
    $region33: #{tpu_custom_call.1} parent=1 // pred_fallthru
      _
    // Predicated region
    $region34: #{tpu_custom_call.1} parent=1 // pred_check
      _
    $region35: #{tpu_custom_call.1} parent=1 // pred_check_branch
      %467 = sbr.rel (0) target = $region37
    $region36: #{tpu_custom_call.1} parent=1 // pred_region
      %468 = dma.done [#allocation3], 512
    $region37: #{tpu_custom_call.1} parent=1 // pred_fallthru
      _
    %469 = vsyncpa [#allocation3], 1

</llo_original>
